<compile_context>
chip_gen: v5e
topology: v5e:2x2
jax: 0.10.0
libtpu: 0.0.40
codegen_flags: <defaults>
</compile_context>

<pallas_src>
import functools

import jax
import jax.numpy as jnp
from jax.experimental import pallas as pl
from jax.experimental.pallas import tpu as pltpu


_VMEM = pl.BlockSpec(memory_space=pltpu.MemorySpace.VMEM)


# ----------------------------------------------------------------------------
# Pallas kernels
# ----------------------------------------------------------------------------

def _conv_lrelu_kernel(a_ref, w_ref, shift_ref, o_ref, *, slope):
    """y = LeakyReLU_slope(A @ W' + shift'); conv bias + BN already folded into W'/shift'."""
    y = jnp.dot(a_ref[...], w_ref[...], preferred_element_type=jnp.float32)
    y = y + shift_ref[...]
    o_ref[...] = jnp.where(y >= 0.0, y, slope * y)


def _lstm_cell(gates, c_prev, H):
    """PyTorch LSTM cell from pre-activation gates laid out [i | f | g | o]."""
    i = jax.nn.sigmoid(gates[:, 0 * H:1 * H])
    f = jax.nn.sigmoid(gates[:, 1 * H:2 * H])
    g = jnp.tanh(gates[:, 2 * H:3 * H])
    o = jax.nn.sigmoid(gates[:, 3 * H:4 * H])
    c = f * c_prev + i * g
    h = o * jnp.tanh(c)
    return h, c


def _bilstm_core(x_ref, wih_ref, gbias_ref, whh_f_ref, whh_b_ref,
                 fwd_out_ref, bwd_out_ref, xpf_ref, xpb_ref,
                 h_f, c_f, h_b, c_b, *, T, H):
    """Shared bidirectional LSTM body (bias=False), directions kept separate.

    wih_ref  : (D, 8H)  [fwd i|f|g|o | bwd i|f|g|o], SequenceWise BN scale folded in.
    gbias_ref: (1, 8H)  BN shift pushed through Wih (acts as a gate bias).
    whh_*    : (H, 4H)  gate-concatenated recurrent weights.
    """
    gbias = gbias_ref[...]

    # --- input projection for BOTH directions, hoisted out of the recurrence.
    # No loop-carried dependency -> these 256-lane matmuls pipeline freely.
    def proj_body(t, carry):
        xp = jnp.dot(x_ref[t], wih_ref[...],
                     preferred_element_type=jnp.float32) + gbias
        xpf_ref[t] = xp[:, 0:4 * H]
        xpb_ref[t] = xp[:, 4 * H:8 * H]
        return carry

    jax.lax.fori_loop(0, T, proj_body, 0, unroll=True)

    h_f[...] = jnp.zeros_like(h_f)
    c_f[...] = jnp.zeros_like(c_f)
    h_b[...] = jnp.zeros_like(h_b)
    c_b[...] = jnp.zeros_like(c_b)

    # --- interleaved forward / backward recurrence (independent chains).
    def rec_body(s, carry):
        tb = T - 1 - s
        # forward step at t = s : ONE (N,H)@(H,4H) matmul for all four gates.
        gates_f = xpf_ref[s] + jnp.dot(h_f[...], whh_f_ref[...],
                                       preferred_element_type=jnp.float32)
        hf, cf = _lstm_cell(gates_f, c_f[...], H)
        h_f[...] = hf
        c_f[...] = cf
        fwd_out_ref[s] = hf
        # backward step at t = T-1-s.
        gates_b = xpb_ref[tb] + jnp.dot(h_b[...], whh_b_ref[...],
                                        preferred_element_type=jnp.float32)
        hb, cb = _lstm_cell(gates_b, c_b[...], H)
        h_b[...] = hb
        c_b[...] = cb
        bwd_out_ref[tb] = hb
        return carry

    jax.lax.fori_loop(0, T, rec_body, 0)


def _bilstm_kernel(x_ref, wih_ref, gbias_ref, whh_f_ref, whh_b_ref, o_ref,
                   bwd_ref, xpf_ref, xpb_ref, h_f, c_f, h_b, c_b, *, T, H):
    """Bidirectional LSTM with direction-sum output (BatchRNN semantics)."""
    _bilstm_core(x_ref, wih_ref, gbias_ref, whh_f_ref, whh_b_ref,
                 o_ref, bwd_ref, xpf_ref, xpb_ref, h_f, c_f, h_b, c_b,
                 T=T, H=H)
    o_ref[...] = o_ref[...] + bwd_ref[...]


def _bilstm_fc_softmax_kernel(x_ref, wih_ref, gbias_ref, whh_f_ref, whh_b_ref,
                              fcw_ref, fcb_ref, o_ref,
                              fwd_ref, bwd_ref, xpf_ref, xpb_ref,
                              h_f, c_f, h_b, c_b, *, T, H):
    """Last BiLSTM layer fused with SequenceWise(BN+Linear) + softmax epilogue."""
    _bilstm_core(x_ref, wih_ref, gbias_ref, whh_f_ref, whh_b_ref,
                 fwd_ref, bwd_ref, xpf_ref, xpb_ref, h_f, c_f, h_b, c_b,
                 T=T, H=H)

    fcw = fcw_ref[...]          # (H, C)   BN scale folded into rows
    fcb = fcb_ref[...]          # (1, C)   BN shift pushed through the Linear

    def fc_body(t, carry):
        hrow = fwd_ref[t] + bwd_ref[t]                                  # (N, H)
        logits = jnp.dot(hrow, fcw, preferred_element_type=jnp.float32) + fcb
        m = jnp.max(logits, axis=-1, keepdims=True)
        e = jnp.exp(logits - m)
        inv = pl.reciprocal(jnp.sum(e, axis=-1, keepdims=True), approx=True)
        o_ref[t] = e * inv
        return carry

    jax.lax.fori_loop(0, T, fc_body, 0, unroll=True)


# ----------------------------------------------------------------------------
# Wrappers around pallas_call
# ----------------------------------------------------------------------------

def _round_up(n, m):
    return (n + m - 1) // m * m


def conv_block(patches, w_fold, shift_fold, slope):
    M = patches.shape[0]
    Mp = _round_up(M, 8)                       # sublane-friendly row count
    if Mp != M:
        patches = jnp.pad(patches, ((0, Mp - M), (0, 0)))
    c_out = w_fold.shape[1]
    out = pl.pallas_call(
        functools.partial(_conv_lrelu_kernel, slope=slope),
        out_shape=jax.ShapeDtypeStruct((Mp, c_out), jnp.float32),
        in_specs=[_VMEM, _VMEM, _VMEM],
        out_specs=_VMEM,
    )(patches, w_fold, shift_fold)
    return out[:M] if Mp != M else out


def bilstm_layer(x_tnd, wih, gbias, whh_f, whh_b):
    T, N, _ = x_tnd.shape
    H = whh_f.shape[0]
    return pl.pallas_call(
        functools.partial(_bilstm_kernel, T=T, H=H),
        out_shape=jax.ShapeDtypeStruct((T, N, H), jnp.float32),
        in_specs=[_VMEM] * 5,
        out_specs=_VMEM,
        scratch_shapes=[
            pltpu.VMEM((T, N, H), jnp.float32),       # backward hidden states
            pltpu.VMEM((T, N, 4 * H), jnp.float32),   # fwd input projection
            pltpu.VMEM((T, N, 4 * H), jnp.float32),   # bwd input projection
            pltpu.VMEM((N, H), jnp.float32),          # h_f
            pltpu.VMEM((N, H), jnp.float32),          # c_f
            pltpu.VMEM((N, H), jnp.float32),          # h_b
            pltpu.VMEM((N, H), jnp.float32),          # c_b
        ],
    )(x_tnd, wih, gbias, whh_f, whh_b)


def bilstm_fc_softmax_layer(x_tnd, wih, gbias, whh_f, whh_b, fc_w, fc_b):
    T, N, _ = x_tnd.shape
    H = whh_f.shape[0]
    n_cls = fc_w.shape[1]
    return pl.pallas_call(
        functools.partial(_bilstm_fc_softmax_kernel, T=T, H=H),
        out_shape=jax.ShapeDtypeStruct((T, N, n_cls), jnp.float32),
        in_specs=[_VMEM] * 7,
        out_specs=_VMEM,
        scratch_shapes=[
            pltpu.VMEM((T, N, H), jnp.float32),       # forward hidden states
            pltpu.VMEM((T, N, H), jnp.float32),       # backward hidden states
            pltpu.VMEM((T, N, 4 * H), jnp.float32),   # fwd input projection
            pltpu.VMEM((T, N, 4 * H), jnp.float32),   # bwd input projection
            pltpu.VMEM((N, H), jnp.float32),          # h_f
            pltpu.VMEM((N, H), jnp.float32),          # c_f
            pltpu.VMEM((N, H), jnp.float32),          # h_b
            pltpu.VMEM((N, H), jnp.float32),          # c_b
        ],
    )(x_tnd, wih, gbias, whh_f, whh_b, fc_w, fc_b)


# ----------------------------------------------------------------------------
# Glue: im2col, BN folding, parameter init, full forward
# ----------------------------------------------------------------------------

def _im2col_1d(x, K, stride):
    """x: (N, Cin, Tin) -> patches (N*T_out, Cin*K), T_out."""
    N, Cin, Tin = x.shape
    T_out = (Tin - K) // stride + 1
    idx = jnp.arange(T_out)[:, None] * stride + jnp.arange(K)[None, :]
    patches = x[:, :, idx]                               # (N, Cin, T_out, K)
    patches = patches.transpose(0, 2, 1, 3).reshape(N * T_out, Cin * K)
    return patches, T_out


def init_params(key, *, nFreq=16, cnn_map=32, kernel_sz=5, stride=2,
                cnn_layers=2, nDownsample=1, rnn_hidden=32, rnn_layers=2,
                num_classes=10):
    keys = iter(jax.random.split(key, 256))

    def nrm(shape, s=0.1):
        return s * jax.random.normal(next(keys), shape, dtype=jnp.float32)

    def bn_fold_params(c, eps=1e-5):
        gamma = 1.0 + nrm((c,))
        beta = nrm((c,))
        mean = nrm((c,))
        var = 0.5 + jax.random.uniform(next(keys), (c,), dtype=jnp.float32)
        scale = gamma / jnp.sqrt(var + eps)
        shift = beta - mean * scale
        return scale, shift

    # conv stack: Conv1d + BatchNorm1d + LeakyReLU(negative_slope = cnn_map),
    # bias + BN folded into the matmul weights/shift.
    conv = []
    in_c, st = nFreq, stride
    for _ in range(cnn_layers):
        w = nrm((cnn_map, in_c, kernel_sz))               # PyTorch Conv1d weight layout
        b = nrm((cnn_map,))
        bn_scale, bn_shift = bn_fold_params(cnn_map)
        w_t = w.reshape(cnn_map, in_c * kernel_sz).T      # (Cin*K, Cout)
        conv.append(dict(
            w=w_t * bn_scale[None, :],                    # fold BN scale
            shift=(bn_shift + b * bn_scale)[None, :],     # fold conv bias + BN shift
            K=kernel_sz, stride=st, slope=float(cnn_map)))
        in_c = cnn_map
        if nDownsample == 1:
            st = 1

    # bidirectional LSTM stack (bias=False); layer 0 has no input BatchNorm.
    # Gate order i, f, g, o; Wih concatenated [fwd | bwd] -> (D, 8H) with BN folded.
    rnns = []
    d, H = cnn_map, rnn_hidden
    for li in range(rnn_layers):
        if li == 0:
            bn_scale = jnp.ones((d,), jnp.float32)
            bn_shift = jnp.zeros((d,), jnp.float32)
        else:
            bn_scale, bn_shift = bn_fold_params(d)
        wih_f = nrm((d, 4 * H))
        wih_b = nrm((d, 4 * H))
        whh_f = nrm((H, 4 * H))
        whh_b = nrm((H, 4 * H))
        wih_cat = jnp.concatenate([wih_f, wih_b], axis=1)     # (d, 8H)
        rnns.append(dict(
            wih=wih_cat * bn_scale[:, None],                  # BN scale into rows
            gbias=(bn_shift @ wih_cat)[None, :],              # BN shift -> gate bias
            whh_f=whh_f, whh_b=whh_b))
        d = H

    # fc: SequenceWise(BatchNorm1d(H) + Linear(H, num_classes, bias=False)), folded.
    fc_scale, fc_shift = bn_fold_params(H)
    fc_w = nrm((H, num_classes))
    fc = dict(w=fc_w * fc_scale[:, None], b=(fc_shift @ fc_w)[None, :])

    return dict(conv=conv, rnns=rnns, fc=fc)


def deepspeech_forward(params, x):
    # Mimic "if x.dim() == 4: x = x.squeeze()" (note: like torch, this would also
    # drop the batch dim when N == 1).
    if x.ndim == 4:
        x = jnp.squeeze(x)
    N = x.shape[0]

    # conv stack (im2col + folded matmul/LeakyReLU kernels)
    for layer in params["conv"]:
        patches, T_out = _im2col_1d(x, layer["K"], layer["stride"])
        y = conv_block(patches, layer["w"], layer["shift"], layer["slope"])
        x = y.reshape(N, T_out, -1).transpose(0, 2, 1)    # back to (N, C, T)

    # (N, C, T) -> (T, N, C)   (torch: transpose(1,2).transpose(0,1))
    h = x.transpose(2, 0, 1)

    # bidirectional LSTM layers with direction-sum; last layer fuses fc + softmax.
    rnns = params["rnns"]
    for rl in rnns[:-1]:
        h = bilstm_layer(h, rl["wih"], rl["gbias"], rl["whh_f"], rl["whh_b"])

    last = rnns[-1]
    probs_tnc = bilstm_fc_softmax_layer(
        h, last["wih"], last["gbias"], last["whh_f"], last["whh_b"],
        params["fc"]["w"], params["fc"]["b"])

    # (T, N, C) -> (N, T, C)
    return probs_tnc.transpose(1, 0, 2)


# ----------------------------------------------------------------------------

if __name__ == "__main__":
    key = jax.random.PRNGKey(0)
    pkey, xkey = jax.random.split(key)

    NUM_CLASSES = 10            # labels = 'abcdefghij'
    params = init_params(pkey, nFreq=16, cnn_map=32, kernel_sz=5, stride=2,
                         cnn_layers=2, nDownsample=1, rnn_hidden=32,
                         rnn_layers=2, num_classes=NUM_CLASSES)

    # (N, 1, nFreq, T) -> squeezed to (N, nFreq, T) inside forward
    x = jax.random.normal(xkey, (2, 1, 16, 32), dtype=jnp.float32)

    out = deepspeech_forward(params, x)
    out = jax.block_until_ready(out)

    # conv1: (32-5)//2+1 = 14 ; conv2: 14-5+1 = 10 -> (N, T, classes) = (2, 10, 10)
    assert out.shape == (2, 10, NUM_CLASSES), out.shape
    assert bool(jnp.all(jnp.isfinite(out)))
    # softmax rows sum to ~1 (approx reciprocal on the EUP)
    assert bool(jnp.allclose(jnp.sum(out, axis=-1), 1.0, atol=1e-2))
    print("KERNEL_OK")
</pallas_src>

<mosaic_0001>
module attributes {stable_mosaic.version = 11 : i64} {
  func.func @_conv_lrelu_kernel(%arg0: memref<32x80xf32, #tpu.memory_space<vmem>>, %arg1: memref<80x32xf32, #tpu.memory_space<vmem>>, %arg2: memref<1x32xf32, #tpu.memory_space<vmem>>, %arg3: memref<32x32xf32, #tpu.memory_space<vmem>>) attributes {dimension_semantics = [], scalar_prefetch = 0 : i64, scratch_operands = 0 : i64, tpu.core_type = #tpu.core_type<tc>} {
    %c0 = arith.constant 0 : index
    %c0_0 = arith.constant 0 : index
    %0 = vector.load %arg0[%c0, %c0_0] : memref<32x80xf32, #tpu.memory_space<vmem>>, vector<32x80xf32>
    %c0_1 = arith.constant 0 : index
    %c0_2 = arith.constant 0 : index
    %1 = vector.load %arg1[%c0_1, %c0_2] : memref<80x32xf32, #tpu.memory_space<vmem>>, vector<80x32xf32>
    %cst = arith.constant dense<0.000000e+00> : vector<32x32xf32>
    %2 = tpu.matmul %0, %1, %cst {dimension_numbers = #tpu.dot_dimension_numbers<[1], [0], [0], [1], [0, 0, 1, 1], [], []>} : vector<32x80xf32>, vector<80x32xf32>, vector<32x32xf32> -> vector<32x32xf32>
    %c0_3 = arith.constant 0 : index
    %c0_4 = arith.constant 0 : index
    %3 = vector.load %arg2[%c0_3, %c0_4] : memref<1x32xf32, #tpu.memory_space<vmem>>, vector<1x32xf32>
    %4 = vector.broadcast %3 : vector<1x32xf32> to vector<32x32xf32>
    %5 = arith.addf %2, %4 : vector<32x32xf32>
    %cst_5 = arith.constant 0.000000e+00 : f32
    %6 = vector.broadcast %cst_5 : f32 to vector<32x32xf32>
    %7 = arith.cmpf oge, %5, %6 : vector<32x32xf32>
    %cst_6 = arith.constant 3.200000e+01 : f32
    %8 = vector.broadcast %cst_6 : f32 to vector<32x32xf32>
    %9 = arith.mulf %8, %5 : vector<32x32xf32>
    %10 = arith.select %7, %5, %9 : vector<32x32xi1>, vector<32x32xf32>
    %c0_7 = arith.constant 0 : index
    %c0_8 = arith.constant 0 : index
    %11 = vector.load %arg3[%c0_7, %c0_8] : memref<32x32xf32, #tpu.memory_space<vmem>>, vector<32x32xf32>
    tpu.vector_store %arg3[%c0_7, %c0_8], %10 {strides = array<i32>} : memref<32x32xf32, #tpu.memory_space<vmem>>, vector<32x32xf32>,
    return
  }
}

</mosaic_0001>

<llo_original>
// kernel: tpu_custom_call.1
$region0: #{tpu_custom_call.1}
  #allocation0 [shape = 'u32[]', space=smem, size = 0x4, offset = 0x4, fixed_abs, tag = 'smem constant byte address 0x4 - core index']
  #allocation1 [shape = 'u32[72,128]{1,0:T(1,128)}', space=vmem, size = 0x9000, scoped, tag = 'internal scratch']
  %s0 = inlined_call_operand.vmem [shape: f32[32,80], index: 0, kind: input, shape index: {}]
  %s1 = inlined_call_operand.vmem [shape: f32[80,32], index: 1, kind: input, shape index: {}]
  %s2 = inlined_call_operand.vmem [shape: f32[1,32], index: 2, kind: input, shape index: {}]
  %s3 = inlined_call_operand.hbm [shape: f32[32,32], index: 3, kind: output, shape index: {}]
  %s4 = sld [smem:[#allocation0]]
  $region22: #{tpu_custom_call.1} parent=0
    _
  %s6 = ssub.s32 1, %s4
  %s7 = scalar_select 0, %s6, %s4
  $region1: #{tpu_custom_call.1} parent=0
    #allocation2 [shape = 'u8[16384]{0}', space=vmem, size = 0x4000, scoped, tag = 'output window, operand 0, single buffered']
    #allocation3 [shape = 's32[1]{0}', space=sflag, size = 0x4, scoped, tag = 'scoped memory for tpu_custom_call.1']
    %8 = vsyncpa [#allocation3], 0
    // Predicated region
    $region2: #{tpu_custom_call.1} parent=1 // pred_check
      _
    $region3: #{tpu_custom_call.1} parent=1 // pred_check_branch
      %10 = sbr.rel (0) target = $region5
    $region4: #{tpu_custom_call.1} parent=1 // pred_region
      _
    $region5: #{tpu_custom_call.1} parent=1 // pred_fallthru
      _
    // Predicated region
    $region6: #{tpu_custom_call.1} parent=1 // pred_check
      _
    $region7: #{tpu_custom_call.1} parent=1 // pred_check_branch
      %12 = sbr.rel (0) target = $region9
    $region8: #{tpu_custom_call.1} parent=1 // pred_region
      _
    $region9: #{tpu_custom_call.1} parent=1 // pred_fallthru
      _
    // Predicated region
    $region10: #{tpu_custom_call.1} parent=1 // pred_check
      _
    $region11: #{tpu_custom_call.1} parent=1 // pred_check_branch
      %14 = sbr.rel (0) target = $region13
    $region12: #{tpu_custom_call.1} parent=1 // pred_region
      _
    $region13: #{tpu_custom_call.1} parent=1 // pred_fallthru
      _
    %v15 = vld [vmem:[%s0] sm:$0xff]
    %v16 = vld [vmem:[%s0 + $0x8] sm:$0xff]
    %v17 = vld [vmem:[%s0 + $0x10] sm:$0xff]
    %v18 = vld [vmem:[%s0 + $0x18] sm:$0xff]
    %v19 = vld [vmem:[%s1] sm:$0xff]
    %v20 = vld [vmem:[%s1 + $0x8] sm:$0xff]
    %v21 = vld [vmem:[%s1 + $0x10] sm:$0xff]
    %v22 = vld [vmem:[%s1 + $0x18] sm:$0xff]
    %v23 = vld [vmem:[%s1 + $0x20] sm:$0xff]
    %v24 = vld [vmem:[%s1 + $0x28] sm:$0xff]
    %v25 = vld [vmem:[%s1 + $0x30] sm:$0xff]
    %v26 = vld [vmem:[%s1 + $0x38] sm:$0xff]
    %v27 = vld [vmem:[%s1 + $0x40] sm:$0xff]
    %v28 = vld [vmem:[%s1 + $0x48] sm:$0xff]
    %v29 = vld [vmem:[%s2] sm:$0x1]
    %v31 = vperm.slane %v29, 0
    %vm33 = vcmask 654336
    %v35 = vsel %vm33, %v15, 0
    %v38 = vsel %vm33, %v16, 0
    %v41 = vsel %vm33, %v17, 0
    %v44 = vsel %vm33, %v18, 0
    %46 = vmatpush.msra.mxu0 0.0
    %47 = vmatpush.msra.mxu0 0.0
    %48 = vmatpush.msra.mxu0 0.0
    %49 = vmatpush.msra.mxu0 0.0
    %50 = vmatpush.msra.mxu0 0.0
    %51 = vmatpush.msra.mxu0 0.0
    %52 = vmatpush.msra.mxu0 %v28
    %53 = vmatpush.msra.mxu0 %v27
    %54 = vmatpush.msra.mxu0 %v26
    %55 = vmatpush.msra.mxu0 %v25
    %56 = vmatpush.msra.mxu0 %v24
    %57 = vmatpush.msra.mxu0 %v23
    %58 = vmatpush.msra.mxu0 %v22
    %59 = vmatpush.msra.mxu0 %v21
    %60 = vmatpush.msra.mxu0 %v20
    %61 = vmatpush.msra.mxu0 %v19
    %62 = vmatmul.f32.gmra.mxu0 %v35
    %v63 = vpop.f32.mrf.mxu0
    %v64 = vadd.f32 %v31, %v63
    %65 = vmatmul.f32.gmra.mxu0 %v38
    %v66 = vpop.f32.mrf.mxu0
    %v67 = vadd.f32 %v31, %v66
    %68 = vmatmul.f32.gmra.mxu0 %v41
    %v69 = vpop.f32.mrf.mxu0
    %v70 = vadd.f32 %v31, %v69
    %71 = vmatmul.f32.gmra.mxu0 %v44
    %v72 = vpop.f32.mrf.mxu0
    %v73 = vadd.f32 %v31, %v72
    %74 = vdwg.mxu0
    %vm75 = vcmp.ge.f32.partialorder %v64, 0.0
    %vm76 = vcmp.ge.f32.partialorder %v67, 0.0
    %vm77 = vcmp.ge.f32.partialorder %v70, 0.0
    %vm78 = vcmp.ge.f32.partialorder %v73, 0.0
    %v79 = vmul.f32 %v64, 32.0
    %v80 = vmul.f32 %v67, 32.0
    %v81 = vmul.f32 %v70, 32.0
    %v82 = vmul.f32 %v73, 32.0
    %v83 = vsel %vm75, %v64, %v79
    %v84 = vsel %vm76, %v67, %v80
    %v85 = vsel %vm77, %v70, %v81
    %v86 = vsel %vm78, %v73, %v82
    %vm87 = vcmask 261120
    %88 = vst.msk [vmem:[#allocation2] sm:$0xff] %vm87, %v83
    %89 = vst.msk [vmem:[#allocation2 + $0x8] sm:$0xff] %vm87, %v84
    %90 = vst.msk [vmem:[#allocation2 + $0x10] sm:$0xff] %vm87, %v85
    %91 = vst.msk [vmem:[#allocation2 + $0x18] sm:$0xff] %vm87, %v86
    // Predicated region
    $region14: #{tpu_custom_call.1} parent=1 // pred_check
      _
    $region15: #{tpu_custom_call.1} parent=1 // pred_check_branch
      %93 = sbr.rel (0) target = $region17
    $region16: #{tpu_custom_call.1} parent=1 // pred_region
      %95 = vsyncadd [#allocation3], 0
      %s96 = sshll.u32 [#allocation2], 4
      %s97 = int_to_ptr.vmem [resolvable:$true] %s96
      %s98 = sshll.u32 %s3, 4
      %s99 = int_to_ptr.hbm [resolvable:$true] %s98
      %104 = dma.vmem_to_hbm [thread:$0]  %s97, 512, %s99, [#allocation3], 128, 128, 8
    $region17: #{tpu_custom_call.1} parent=1 // pred_fallthru
      _
    // Predicated region
    $region18: #{tpu_custom_call.1} parent=1 // pred_check
      _
    $region19: #{tpu_custom_call.1} parent=1 // pred_check_branch
      %106 = sbr.rel (0) target = $region21
    $region20: #{tpu_custom_call.1} parent=1 // pred_region
      %108 = dma.done [#allocation3], 512
    $region21: #{tpu_custom_call.1} parent=1 // pred_fallthru
      _
    %109 = vsyncpa [#allocation3], 1

</llo_original>
